<compile_context>
chip_gen: v7x
topology: tpu7x:2x2x1
jax: 0.10.0
libtpu: 0.0.40
codegen_flags: <defaults>
</compile_context>

<pallas_src>
import jax
import jax.numpy as jnp
from jax import lax
from jax.experimental import pallas as pl
from jax.experimental.pallas import tpu as pltpu


def lstm_tagger_kernel(x_ref, wih_ref, whh_ref, b_ref, wt_ref, bt_ref,
                       out_ref, xproj_sc, hs_sc):
    S, _ = x_ref.shape
    H = whh_ref.shape[0]

    # (1) Hoisted input projection: one batched matmul for the whole sequence.
    xproj_sc[...] = (
        jnp.dot(x_ref[...], wih_ref[...], preferred_element_type=jnp.float32)
        + b_ref[...])                                           # (S, 4H) f32

    whh = whh_ref[...]                                          # (H, 4H) bf16, loaded once

    # (2) Serial recurrence; h/c live in vregs as fori_loop carries.
    def step(t, carry):
        h, c = carry                                            # (1, H) f32
        gates = xproj_sc[pl.ds(t, 1), :] + jnp.dot(
            h.astype(jnp.bfloat16), whh,
            preferred_element_type=jnp.float32)                 # (1, 4H)
        # Gate slices cost a few lane shifts (XLU) off the VALU path;
        # acceptable at H=32 (4H = 128 = one lane span).
        i_g = jax.nn.sigmoid(gates[:, 0 * H:1 * H])
        f_g = jax.nn.sigmoid(gates[:, 1 * H:2 * H])
        g_g = jnp.tanh(gates[:, 2 * H:3 * H])
        o_g = jax.nn.sigmoid(gates[:, 3 * H:4 * H])
        c_new = f_g * c + i_g * g_g
        h_new = o_g * jnp.tanh(c_new)
        hs_sc[pl.ds(t, 1), :] = h_new                           # write-only, off h/c chain
        return (h_new, c_new)

    h0 = jnp.zeros((1, H), jnp.float32)
    c0 = jnp.zeros((1, H), jnp.float32)
    lax.fori_loop(0, S, step, (h0, c0), unroll=True)            # fully unrolled

    # (3) hidden2tag + log_softmax (T padded to 128 lanes by the wrapper;
    #     padded bias = -1e30 -> exp underflows to 0, softmax unchanged).
    tag_space = (jnp.dot(hs_sc[...].astype(jnp.bfloat16), wt_ref[...],
                         preferred_element_type=jnp.float32)
                 + bt_ref[...])                                 # (S, T_pad)
    m = jnp.max(tag_space, axis=1, keepdims=True)
    shifted = tag_space - m
    lse = jnp.log(jnp.sum(jnp.exp(shifted), axis=1, keepdims=True))
    out_ref[...] = shifted - lse


def lstm_tagger_forward(sentence, params):
    """sentence: (S,) int32 token ids.  Returns (S, tagset_size) log-probs."""
    emb_table, w_ih, w_hh, b, w_tag, b_tag = params
    S = sentence.shape[0]
    H = w_hh.shape[0]
    T = w_tag.shape[1]
    T_pad = 128   # lane-dense output width

    # Embedding gather (plain-JAX glue); matmul operands cast to bf16.
    embeds = emb_table[sentence].astype(jnp.bfloat16)           # (S, E)
    w_ih_b = w_ih.astype(jnp.bfloat16)                          # (E, 4H)
    w_hh_b = w_hh.astype(jnp.bfloat16)                          # (H, 4H)
    # Pad tag projection to 128 lanes; padded bias = -1e30 so those columns
    # contribute exp(...) == 0 to the in-kernel log_softmax.
    w_tag_p = jnp.zeros((H, T_pad), jnp.bfloat16).at[:, :T].set(
        w_tag.astype(jnp.bfloat16))
    b_tag_p = jnp.full((1, T_pad), -1e30, jnp.float32).at[:, :T].set(b_tag)

    vmem = pl.BlockSpec(memory_space=pltpu.MemorySpace.VMEM)
    out_padded = pl.pallas_call(
        lstm_tagger_kernel,
        out_shape=jax.ShapeDtypeStruct((S, T_pad), jnp.float32),
        in_specs=[vmem] * 6,
        out_specs=vmem,
        scratch_shapes=[
            pltpu.VMEM((S, 4 * H), jnp.float32),   # xproj = X @ W_ih + b
            pltpu.VMEM((S, H), jnp.float32),       # per-step hidden states
        ],
    )(embeds, w_ih_b, w_hh_b, b, w_tag_p, b_tag_p)
    # TODO(synk): for long sequences / batched sentences, tile the projection
    # phases with a grid over S and add a "parallel" batch axis (v7x 2nd TC);
    # the recurrence itself stays serial.
    return out_padded[:, :T]


def init_params(key, embedding_dim, hidden_dim, vocab_size, tagset_size):
    E, H, V, T = embedding_dim, hidden_dim, vocab_size, tagset_size
    k = jax.random.split(key, 7)
    # Embedding ~ N(0,1), padding_idx=0 row zeroed (PyTorch behavior at init).
    emb = jax.random.normal(k[0], (V, E), jnp.float32)
    emb = emb.at[0].set(0.0)
    s = 1.0 / jnp.sqrt(H)
    # LSTM weights stored transposed for x @ W; gate order (i, f, g, o).
    w_ih = jax.random.uniform(k[1], (E, 4 * H), jnp.float32, -s, s)
    w_hh = jax.random.uniform(k[2], (H, 4 * H), jnp.float32, -s, s)
    b_ih = jax.random.uniform(k[3], (1, 4 * H), jnp.float32, -s, s)
    b_hh = jax.random.uniform(k[4], (1, 4 * H), jnp.float32, -s, s)
    b = b_ih + b_hh
    w_tag = jax.random.uniform(k[5], (H, T), jnp.float32, -s, s)
    b_tag = jax.random.uniform(k[6], (1, T), jnp.float32, -s, s)
    return emb, w_ih, w_hh, b, w_tag, b_tag


def reference_forward(sentence, params, matmul_dtype=jnp.float32):
    """Pure-JAX reference.  matmul_dtype=jnp.bfloat16 mirrors the kernel's MXU
    precision (bf16 matmul inputs, f32 accumulation)."""
    emb_table, w_ih, w_hh, b, w_tag, b_tag = params
    H = w_hh.shape[0]
    cast = lambda a: a.astype(matmul_dtype)
    embeds = emb_table[sentence]
    xproj = jnp.dot(cast(embeds), cast(w_ih),
                    preferred_element_type=jnp.float32) + b

    def step(carry, xp_t):
        h, c = carry
        gates = xp_t[None, :] + jnp.dot(cast(h), cast(w_hh),
                                        preferred_element_type=jnp.float32)
        i = jax.nn.sigmoid(gates[:, 0 * H:1 * H])
        f = jax.nn.sigmoid(gates[:, 1 * H:2 * H])
        g = jnp.tanh(gates[:, 2 * H:3 * H])
        o = jax.nn.sigmoid(gates[:, 3 * H:4 * H])
        c = f * c + i * g
        h = o * jnp.tanh(c)
        return (h, c), h[0]

    h0 = jnp.zeros((1, H), jnp.float32)
    c0 = jnp.zeros((1, H), jnp.float32)
    _, hs = lax.scan(step, (h0, c0), xproj)
    tag_space = jnp.dot(cast(hs), cast(w_tag),
                        preferred_element_type=jnp.float32) + b_tag
    return jax.nn.log_softmax(tag_space, axis=1)


if __name__ == "__main__":
    embedding_dim = 32
    hidden_dim = 32
    vocab_size = 16
    tagset_size = 8
    seq_len = 8

    key = jax.random.PRNGKey(0)
    pkey, skey = jax.random.split(key)
    params = init_params(pkey, embedding_dim, hidden_dim, vocab_size, tagset_size)
    sentence = jax.random.randint(skey, (seq_len,), 0, vocab_size, dtype=jnp.int32)

    out = lstm_tagger_forward(sentence, params)
    out = jax.block_until_ready(out)
    assert out.shape == (seq_len, tagset_size)

    # Precision-matched reference (bf16 matmul inputs, f32 accumulation).
    ref_bf16 = reference_forward(sentence, params, matmul_dtype=jnp.bfloat16)
    assert jnp.allclose(out, ref_bf16, atol=2e-3, rtol=2e-3), "mismatch vs bf16 reference"
    # Loose sanity check vs the full-f32 reference (guards semantic errors;
    # the only difference is bf16 matmul rounding, well under 0.1).
    ref_f32 = reference_forward(sentence, params, matmul_dtype=jnp.float32)
    assert jnp.allclose(out, ref_f32, atol=1e-1), "mismatch vs f32 reference"
    print("KERNEL_OK")
</pallas_src>

<mosaic_0001>
module attributes {stable_mosaic.version = 11 : i64} {
  func.func @lstm_tagger_kernel(%arg0: memref<8x32xbf16, #tpu.memory_space<vmem>>, %arg1: memref<32x128xbf16, #tpu.memory_space<vmem>>, %arg2: memref<32x128xbf16, #tpu.memory_space<vmem>>, %arg3: memref<1x128xf32, #tpu.memory_space<vmem>>, %arg4: memref<32x128xbf16, #tpu.memory_space<vmem>>, %arg5: memref<1x128xf32, #tpu.memory_space<vmem>>, %arg6: memref<8x128xf32, #tpu.memory_space<vmem>>, %arg7: memref<8x128xf32, #tpu.memory_space<vmem>>, %arg8: memref<8x32xf32, #tpu.memory_space<vmem>>) attributes {dimension_semantics = [], scalar_prefetch = 0 : i64, scratch_operands = 2 : i64, tpu.core_type = #tpu.core_type<tc>} {
    %c0 = arith.constant 0 : index
    %c0_0 = arith.constant 0 : index
    %0 = vector.load %arg0[%c0, %c0_0] : memref<8x32xbf16, #tpu.memory_space<vmem>>, vector<8x32xbf16>
    %c0_1 = arith.constant 0 : index
    %c0_2 = arith.constant 0 : index
    %1 = vector.load %arg1[%c0_1, %c0_2] : memref<32x128xbf16, #tpu.memory_space<vmem>>, vector<32x128xbf16>
    %cst = arith.constant dense<0.000000e+00> : vector<8x128xf32>
    %2 = tpu.matmul %0, %1, %cst {dimension_numbers = #tpu.dot_dimension_numbers<[1], [0], [0], [1], [0, 0, 1, 1], [], []>} : vector<8x32xbf16>, vector<32x128xbf16>, vector<8x128xf32> -> vector<8x128xf32>
    %c0_3 = arith.constant 0 : index
    %c0_4 = arith.constant 0 : index
    %3 = vector.load %arg3[%c0_3, %c0_4] : memref<1x128xf32, #tpu.memory_space<vmem>>, vector<1x128xf32>
    %4 = vector.broadcast %3 : vector<1x128xf32> to vector<8x128xf32>
    %5 = arith.addf %2, %4 : vector<8x128xf32>
    %c0_5 = arith.constant 0 : index
    %c0_6 = arith.constant 0 : index
    %6 = vector.load %arg7[%c0_5, %c0_6] : memref<8x128xf32, #tpu.memory_space<vmem>>, vector<8x128xf32>
    tpu.vector_store %arg7[%c0_5, %c0_6], %5 {strides = array<i32>} : memref<8x128xf32, #tpu.memory_space<vmem>>, vector<8x128xf32>,
    %c0_7 = arith.constant 0 : index
    %c0_8 = arith.constant 0 : index
    %7 = vector.load %arg2[%c0_7, %c0_8] : memref<32x128xbf16, #tpu.memory_space<vmem>>, vector<32x128xbf16>
    %cst_9 = arith.constant 0.000000e+00 : f32
    %8 = vector.broadcast %cst_9 : f32 to vector<1x32xf32>
    %cst_10 = arith.constant 0.000000e+00 : f32
    %9 = vector.broadcast %cst_10 : f32 to vector<1x32xf32>
    %c0_i32 = arith.constant 0 : i32
    %10 = arith.index_cast %c0_i32 : i32 to index
    %c0_11 = arith.constant 0 : index
    %11 = vector.load %arg7[%10, %c0_11] : memref<8x128xf32, #tpu.memory_space<vmem>>, vector<1x128xf32>
    %12 = arith.truncf %8 : vector<1x32xf32> to vector<1x32xbf16>
    %cst_12 = arith.constant dense<0.000000e+00> : vector<1x128xf32>
    %13 = tpu.matmul %12, %7, %cst_12 {dimension_numbers = #tpu.dot_dimension_numbers<[1], [0], [0], [1], [0, 0, 1, 1], [], []>} : vector<1x32xbf16>, vector<32x128xbf16>, vector<1x128xf32> -> vector<1x128xf32>
    %14 = arith.addf %11, %13 : vector<1x128xf32>
    %15 = vector.extract_strided_slice %14 {offsets = [0, 0], sizes = [1, 32], strides = [1, 1]} : vector<1x128xf32> to vector<1x32xf32>
    %16 = arith.negf %15 : vector<1x32xf32>
    %17 = math.exp %16 : vector<1x32xf32>
    %cst_13 = arith.constant 1.000000e+00 : f32
    %18 = vector.broadcast %cst_13 : f32 to vector<1x32xf32>
    %19 = arith.addf %18, %17 : vector<1x32xf32>
    %20 = arith.divf %18, %19 : vector<1x32xf32>
    %21 = vector.extract_strided_slice %14 {offsets = [0, 32], sizes = [1, 32], strides = [1, 1]} : vector<1x128xf32> to vector<1x32xf32>
    %22 = arith.negf %21 : vector<1x32xf32>
    %23 = math.exp %22 : vector<1x32xf32>
    %cst_14 = arith.constant 1.000000e+00 : f32
    %24 = vector.broadcast %cst_14 : f32 to vector<1x32xf32>
    %25 = arith.addf %24, %23 : vector<1x32xf32>
    %26 = arith.divf %24, %25 : vector<1x32xf32>
    %27 = vector.extract_strided_slice %14 {offsets = [0, 64], sizes = [1, 32], strides = [1, 1]} : vector<1x128xf32> to vector<1x32xf32>
    %28 = math.tanh %27 : vector<1x32xf32>
    %29 = vector.extract_strided_slice %14 {offsets = [0, 96], sizes = [1, 32], strides = [1, 1]} : vector<1x128xf32> to vector<1x32xf32>
    %30 = arith.negf %29 : vector<1x32xf32>
    %31 = math.exp %30 : vector<1x32xf32>
    %cst_15 = arith.constant 1.000000e+00 : f32
    %32 = vector.broadcast %cst_15 : f32 to vector<1x32xf32>
    %33 = arith.addf %32, %31 : vector<1x32xf32>
    %34 = arith.divf %32, %33 : vector<1x32xf32>
    %35 = arith.mulf %26, %9 : vector<1x32xf32>
    %36 = arith.mulf %20, %28 : vector<1x32xf32>
    %37 = arith.addf %35, %36 : vector<1x32xf32>
    %38 = math.tanh %37 : vector<1x32xf32>
    %39 = arith.mulf %34, %38 : vector<1x32xf32>
    %40 = arith.index_cast %c0_i32 : i32 to index
    %c0_16 = arith.constant 0 : index
    %41 = vector.load %arg8[%40, %c0_16] : memref<8x32xf32, #tpu.memory_space<vmem>>, vector<1x32xf32>
    tpu.vector_store %arg8[%40, %c0_16], %39 {strides = array<i32>} : memref<8x32xf32, #tpu.memory_space<vmem>>, vector<1x32xf32>,
    %c1_i32 = arith.constant 1 : i32
    %42 = arith.index_cast %c1_i32 : i32 to index
    %c0_17 = arith.constant 0 : index
    %43 = vector.load %arg7[%42, %c0_17] : memref<8x128xf32, #tpu.memory_space<vmem>>, vector<1x128xf32>
    %44 = arith.truncf %39 : vector<1x32xf32> to vector<1x32xbf16>
    %cst_18 = arith.constant dense<0.000000e+00> : vector<1x128xf32>
    %45 = tpu.matmul %44, %7, %cst_18 {dimension_numbers = #tpu.dot_dimension_numbers<[1], [0], [0], [1], [0, 0, 1, 1], [], []>} : vector<1x32xbf16>, vector<32x128xbf16>, vector<1x128xf32> -> vector<1x128xf32>
    %46 = arith.addf %43, %45 : vector<1x128xf32>
    %47 = vector.extract_strided_slice %46 {offsets = [0, 0], sizes = [1, 32], strides = [1, 1]} : vector<1x128xf32> to vector<1x32xf32>
    %48 = arith.negf %47 : vector<1x32xf32>
    %49 = math.exp %48 : vector<1x32xf32>
    %cst_19 = arith.constant 1.000000e+00 : f32
    %50 = vector.broadcast %cst_19 : f32 to vector<1x32xf32>
    %51 = arith.addf %50, %49 : vector<1x32xf32>
    %52 = arith.divf %50, %51 : vector<1x32xf32>
    %53 = vector.extract_strided_slice %46 {offsets = [0, 32], sizes = [1, 32], strides = [1, 1]} : vector<1x128xf32> to vector<1x32xf32>
    %54 = arith.negf %53 : vector<1x32xf32>
    %55 = math.exp %54 : vector<1x32xf32>
    %cst_20 = arith.constant 1.000000e+00 : f32
    %56 = vector.broadcast %cst_20 : f32 to vector<1x32xf32>
    %57 = arith.addf %56, %55 : vector<1x32xf32>
    %58 = arith.divf %56, %57 : vector<1x32xf32>
    %59 = vector.extract_strided_slice %46 {offsets = [0, 64], sizes = [1, 32], strides = [1, 1]} : vector<1x128xf32> to vector<1x32xf32>
    %60 = math.tanh %59 : vector<1x32xf32>
    %61 = vector.extract_strided_slice %46 {offsets = [0, 96], sizes = [1, 32], strides = [1, 1]} : vector<1x128xf32> to vector<1x32xf32>
    %62 = arith.negf %61 : vector<1x32xf32>
    %63 = math.exp %62 : vector<1x32xf32>
    %cst_21 = arith.constant 1.000000e+00 : f32
    %64 = vector.broadcast %cst_21 : f32 to vector<1x32xf32>
    %65 = arith.addf %64, %63 : vector<1x32xf32>
    %66 = arith.divf %64, %65 : vector<1x32xf32>
    %67 = arith.mulf %58, %37 : vector<1x32xf32>
    %68 = arith.mulf %52, %60 : vector<1x32xf32>
    %69 = arith.addf %67, %68 : vector<1x32xf32>
    %70 = math.tanh %69 : vector<1x32xf32>
    %71 = arith.mulf %66, %70 : vector<1x32xf32>
    %72 = arith.index_cast %c1_i32 : i32 to index
    %c0_22 = arith.constant 0 : index
    %73 = vector.load %arg8[%72, %c0_22] : memref<8x32xf32, #tpu.memory_space<vmem>>, vector<1x32xf32>
    tpu.vector_store %arg8[%72, %c0_22], %71 {strides = array<i32>} : memref<8x32xf32, #tpu.memory_space<vmem>>, vector<1x32xf32>,
    %c2_i32 = arith.constant 2 : i32
    %74 = arith.index_cast %c2_i32 : i32 to index
    %c0_23 = arith.constant 0 : index
    %75 = vector.load %arg7[%74, %c0_23] : memref<8x128xf32, #tpu.memory_space<vmem>>, vector<1x128xf32>
    %76 = arith.truncf %71 : vector<1x32xf32> to vector<1x32xbf16>
    %cst_24 = arith.constant dense<0.000000e+00> : vector<1x128xf32>
    %77 = tpu.matmul %76, %7, %cst_24 {dimension_numbers = #tpu.dot_dimension_numbers<[1], [0], [0], [1], [0, 0, 1, 1], [], []>} : vector<1x32xbf16>, vector<32x128xbf16>, vector<1x128xf32> -> vector<1x128xf32>
    %78 = arith.addf %75, %77 : vector<1x128xf32>
    %79 = vector.extract_strided_slice %78 {offsets = [0, 0], sizes = [1, 32], strides = [1, 1]} : vector<1x128xf32> to vector<1x32xf32>
    %80 = arith.negf %79 : vector<1x32xf32>
    %81 = math.exp %80 : vector<1x32xf32>
    %cst_25 = arith.constant 1.000000e+00 : f32
    %82 = vector.broadcast %cst_25 : f32 to vector<1x32xf32>
    %83 = arith.addf %82, %81 : vector<1x32xf32>
    %84 = arith.divf %82, %83 : vector<1x32xf32>
    %85 = vector.extract_strided_slice %78 {offsets = [0, 32], sizes = [1, 32], strides = [1, 1]} : vector<1x128xf32> to vector<1x32xf32>
    %86 = arith.negf %85 : vector<1x32xf32>
    %87 = math.exp %86 : vector<1x32xf32>
    %cst_26 = arith.constant 1.000000e+00 : f32
    %88 = vector.broadcast %cst_26 : f32 to vector<1x32xf32>
    %89 = arith.addf %88, %87 : vector<1x32xf32>
    %90 = arith.divf %88, %89 : vector<1x32xf32>
    %91 = vector.extract_strided_slice %78 {offsets = [0, 64], sizes = [1, 32], strides = [1, 1]} : vector<1x128xf32> to vector<1x32xf32>
    %92 = math.tanh %91 : vector<1x32xf32>
    %93 = vector.extract_strided_slice %78 {offsets = [0, 96], sizes = [1, 32], strides = [1, 1]} : vector<1x128xf32> to vector<1x32xf32>
    %94 = arith.negf %93 : vector<1x32xf32>
    %95 = math.exp %94 : vector<1x32xf32>
    %cst_27 = arith.constant 1.000000e+00 : f32
    %96 = vector.broadcast %cst_27 : f32 to vector<1x32xf32>
    %97 = arith.addf %96, %95 : vector<1x32xf32>
    %98 = arith.divf %96, %97 : vector<1x32xf32>
    %99 = arith.mulf %90, %69 : vector<1x32xf32>
    %100 = arith.mulf %84, %92 : vector<1x32xf32>
    %101 = arith.addf %99, %100 : vector<1x32xf32>
    %102 = math.tanh %101 : vector<1x32xf32>
    %103 = arith.mulf %98, %102 : vector<1x32xf32>
    %104 = arith.index_cast %c2_i32 : i32 to index
    %c0_28 = arith.constant 0 : index
    %105 = vector.load %arg8[%104, %c0_28] : memref<8x32xf32, #tpu.memory_space<vmem>>, vector<1x32xf32>
    tpu.vector_store %arg8[%104, %c0_28], %103 {strides = array<i32>} : memref<8x32xf32, #tpu.memory_space<vmem>>, vector<1x32xf32>,
    %c3_i32 = arith.constant 3 : i32
    %106 = arith.index_cast %c3_i32 : i32 to index
    %c0_29 = arith.constant 0 : index
    %107 = vector.load %arg7[%106, %c0_29] : memref<8x128xf32, #tpu.memory_space<vmem>>, vector<1x128xf32>
    %108 = arith.truncf %103 : vector<1x32xf32> to vector<1x32xbf16>
    %cst_30 = arith.constant dense<0.000000e+00> : vector<1x128xf32>
    %109 = tpu.matmul %108, %7, %cst_30 {dimension_numbers = #tpu.dot_dimension_numbers<[1], [0], [0], [1], [0, 0, 1, 1], [], []>} : vector<1x32xbf16>, vector<32x128xbf16>, vector<1x128xf32> -> vector<1x128xf32>
    %110 = arith.addf %107, %109 : vector<1x128xf32>
    %111 = vector.extract_strided_slice %110 {offsets = [0, 0], sizes = [1, 32], strides = [1, 1]} : vector<1x128xf32> to vector<1x32xf32>
    %112 = arith.negf %111 : vector<1x32xf32>
    %113 = math.exp %112 : vector<1x32xf32>
    %cst_31 = arith.constant 1.000000e+00 : f32
    %114 = vector.broadcast %cst_31 : f32 to vector<1x32xf32>
    %115 = arith.addf %114, %113 : vector<1x32xf32>
    %116 = arith.divf %114, %115 : vector<1x32xf32>
    %117 = vector.extract_strided_slice %110 {offsets = [0, 32], sizes = [1, 32], strides = [1, 1]} : vector<1x128xf32> to vector<1x32xf32>
    %118 = arith.negf %117 : vector<1x32xf32>
    %119 = math.exp %118 : vector<1x32xf32>
    %cst_32 = arith.constant 1.000000e+00 : f32
    %120 = vector.broadcast %cst_32 : f32 to vector<1x32xf32>
    %121 = arith.addf %120, %119 : vector<1x32xf32>
    %122 = arith.divf %120, %121 : vector<1x32xf32>
    %123 = vector.extract_strided_slice %110 {offsets = [0, 64], sizes = [1, 32], strides = [1, 1]} : vector<1x128xf32> to vector<1x32xf32>
    %124 = math.tanh %123 : vector<1x32xf32>
    %125 = vector.extract_strided_slice %110 {offsets = [0, 96], sizes = [1, 32], strides = [1, 1]} : vector<1x128xf32> to vector<1x32xf32>
    %126 = arith.negf %125 : vector<1x32xf32>
    %127 = math.exp %126 : vector<1x32xf32>
    %cst_33 = arith.constant 1.000000e+00 : f32
    %128 = vector.broadcast %cst_33 : f32 to vector<1x32xf32>
    %129 = arith.addf %128, %127 : vector<1x32xf32>
    %130 = arith.divf %128, %129 : vector<1x32xf32>
    %131 = arith.mulf %122, %101 : vector<1x32xf32>
    %132 = arith.mulf %116, %124 : vector<1x32xf32>
    %133 = arith.addf %131, %132 : vector<1x32xf32>
    %134 = math.tanh %133 : vector<1x32xf32>
    %135 = arith.mulf %130, %134 : vector<1x32xf32>
    %136 = arith.index_cast %c3_i32 : i32 to index
    %c0_34 = arith.constant 0 : index
    %137 = vector.load %arg8[%136, %c0_34] : memref<8x32xf32, #tpu.memory_space<vmem>>, vector<1x32xf32>
    tpu.vector_store %arg8[%136, %c0_34], %135 {strides = array<i32>} : memref<8x32xf32, #tpu.memory_space<vmem>>, vector<1x32xf32>,
    %c4_i32 = arith.constant 4 : i32
    %138 = arith.index_cast %c4_i32 : i32 to index
    %c0_35 = arith.constant 0 : index
    %139 = vector.load %arg7[%138, %c0_35] : memref<8x128xf32, #tpu.memory_space<vmem>>, vector<1x128xf32>
    %140 = arith.truncf %135 : vector<1x32xf32> to vector<1x32xbf16>
    %cst_36 = arith.constant dense<0.000000e+00> : vector<1x128xf32>
    %141 = tpu.matmul %140, %7, %cst_36 {dimension_numbers = #tpu.dot_dimension_numbers<[1], [0], [0], [1], [0, 0, 1, 1], [], []>} : vector<1x32xbf16>, vector<32x128xbf16>, vector<1x128xf32> -> vector<1x128xf32>
    %142 = arith.addf %139, %141 : vector<1x128xf32>
    %143 = vector.extract_strided_slice %142 {offsets = [0, 0], sizes = [1, 32], strides = [1, 1]} : vector<1x128xf32> to vector<1x32xf32>
    %144 = arith.negf %143 : vector<1x32xf32>
    %145 = math.exp %144 : vector<1x32xf32>
    %cst_37 = arith.constant 1.000000e+00 : f32
    %146 = vector.broadcast %cst_37 : f32 to vector<1x32xf32>
    %147 = arith.addf %146, %145 : vector<1x32xf32>
    %148 = arith.divf %146, %147 : vector<1x32xf32>
    %149 = vector.extract_strided_slice %142 {offsets = [0, 32], sizes = [1, 32], strides = [1, 1]} : vector<1x128xf32> to vector<1x32xf32>
    %150 = arith.negf %149 : vector<1x32xf32>
    %151 = math.exp %150 : vector<1x32xf32>
    %cst_38 = arith.constant 1.000000e+00 : f32
    %152 = vector.broadcast %cst_38 : f32 to vector<1x32xf32>
    %153 = arith.addf %152, %151 : vector<1x32xf32>
    %154 = arith.divf %152, %153 : vector<1x32xf32>
    %155 = vector.extract_strided_slice %142 {offsets = [0, 64], sizes = [1, 32], strides = [1, 1]} : vector<1x128xf32> to vector<1x32xf32>
    %156 = math.tanh %155 : vector<1x32xf32>
    %157 = vector.extract_strided_slice %142 {offsets = [0, 96], sizes = [1, 32], strides = [1, 1]} : vector<1x128xf32> to vector<1x32xf32>
    %158 = arith.negf %157 : vector<1x32xf32>
    %159 = math.exp %158 : vector<1x32xf32>
    %cst_39 = arith.constant 1.000000e+00 : f32
    %160 = vector.broadcast %cst_39 : f32 to vector<1x32xf32>
    %161 = arith.addf %160, %159 : vector<1x32xf32>
    %162 = arith.divf %160, %161 : vector<1x32xf32>
    %163 = arith.mulf %154, %133 : vector<1x32xf32>
    %164 = arith.mulf %148, %156 : vector<1x32xf32>
    %165 = arith.addf %163, %164 : vector<1x32xf32>
    %166 = math.tanh %165 : vector<1x32xf32>
    %167 = arith.mulf %162, %166 : vector<1x32xf32>
    %168 = arith.index_cast %c4_i32 : i32 to index
    %c0_40 = arith.constant 0 : index
    %169 = vector.load %arg8[%168, %c0_40] : memref<8x32xf32, #tpu.memory_space<vmem>>, vector<1x32xf32>
    tpu.vector_store %arg8[%168, %c0_40], %167 {strides = array<i32>} : memref<8x32xf32, #tpu.memory_space<vmem>>, vector<1x32xf32>,
    %c5_i32 = arith.constant 5 : i32
    %170 = arith.index_cast %c5_i32 : i32 to index
    %c0_41 = arith.constant 0 : index
    %171 = vector.load %arg7[%170, %c0_41] : memref<8x128xf32, #tpu.memory_space<vmem>>, vector<1x128xf32>
    %172 = arith.truncf %167 : vector<1x32xf32> to vector<1x32xbf16>
    %cst_42 = arith.constant dense<0.000000e+00> : vector<1x128xf32>
    %173 = tpu.matmul %172, %7, %cst_42 {dimension_numbers = #tpu.dot_dimension_numbers<[1], [0], [0], [1], [0, 0, 1, 1], [], []>} : vector<1x32xbf16>, vector<32x128xbf16>, vector<1x128xf32> -> vector<1x128xf32>
    %174 = arith.addf %171, %173 : vector<1x128xf32>
    %175 = vector.extract_strided_slice %174 {offsets = [0, 0], sizes = [1, 32], strides = [1, 1]} : vector<1x128xf32> to vector<1x32xf32>
    %176 = arith.negf %175 : vector<1x32xf32>
    %177 = math.exp %176 : vector<1x32xf32>
    %cst_43 = arith.constant 1.000000e+00 : f32
    %178 = vector.broadcast %cst_43 : f32 to vector<1x32xf32>
    %179 = arith.addf %178, %177 : vector<1x32xf32>
    %180 = arith.divf %178, %179 : vector<1x32xf32>
    %181 = vector.extract_strided_slice %174 {offsets = [0, 32], sizes = [1, 32], strides = [1, 1]} : vector<1x128xf32> to vector<1x32xf32>
    %182 = arith.negf %181 : vector<1x32xf32>
    %183 = math.exp %182 : vector<1x32xf32>
    %cst_44 = arith.constant 1.000000e+00 : f32
    %184 = vector.broadcast %cst_44 : f32 to vector<1x32xf32>
    %185 = arith.addf %184, %183 : vector<1x32xf32>
    %186 = arith.divf %184, %185 : vector<1x32xf32>
    %187 = vector.extract_strided_slice %174 {offsets = [0, 64], sizes = [1, 32], strides = [1, 1]} : vector<1x128xf32> to vector<1x32xf32>
    %188 = math.tanh %187 : vector<1x32xf32>
    %189 = vector.extract_strided_slice %174 {offsets = [0, 96], sizes = [1, 32], strides = [1, 1]} : vector<1x128xf32> to vector<1x32xf32>
    %190 = arith.negf %189 : vector<1x32xf32>
    %191 = math.exp %190 : vector<1x32xf32>
    %cst_45 = arith.constant 1.000000e+00 : f32
    %192 = vector.broadcast %cst_45 : f32 to vector<1x32xf32>
    %193 = arith.addf %192, %191 : vector<1x32xf32>
    %194 = arith.divf %192, %193 : vector<1x32xf32>
    %195 = arith.mulf %186, %165 : vector<1x32xf32>
    %196 = arith.mulf %180, %188 : vector<1x32xf32>
    %197 = arith.addf %195, %196 : vector<1x32xf32>
    %198 = math.tanh %197 : vector<1x32xf32>
    %199 = arith.mulf %194, %198 : vector<1x32xf32>
    %200 = arith.index_cast %c5_i32 : i32 to index
    %c0_46 = arith.constant 0 : index
    %201 = vector.load %arg8[%200, %c0_46] : memref<8x32xf32, #tpu.memory_space<vmem>>, vector<1x32xf32>
    tpu.vector_store %arg8[%200, %c0_46], %199 {strides = array<i32>} : memref<8x32xf32, #tpu.memory_space<vmem>>, vector<1x32xf32>,
    %c6_i32 = arith.constant 6 : i32
    %202 = arith.index_cast %c6_i32 : i32 to index
    %c0_47 = arith.constant 0 : index
    %203 = vector.load %arg7[%202, %c0_47] : memref<8x128xf32, #tpu.memory_space<vmem>>, vector<1x128xf32>
    %204 = arith.truncf %199 : vector<1x32xf32> to vector<1x32xbf16>
    %cst_48 = arith.constant dense<0.000000e+00> : vector<1x128xf32>
    %205 = tpu.matmul %204, %7, %cst_48 {dimension_numbers = #tpu.dot_dimension_numbers<[1], [0], [0], [1], [0, 0, 1, 1], [], []>} : vector<1x32xbf16>, vector<32x128xbf16>, vector<1x128xf32> -> vector<1x128xf32>
    %206 = arith.addf %203, %205 : vector<1x128xf32>
    %207 = vector.extract_strided_slice %206 {offsets = [0, 0], sizes = [1, 32], strides = [1, 1]} : vector<1x128xf32> to vector<1x32xf32>
    %208 = arith.negf %207 : vector<1x32xf32>
    %209 = math.exp %208 : vector<1x32xf32>
    %cst_49 = arith.constant 1.000000e+00 : f32
    %210 = vector.broadcast %cst_49 : f32 to vector<1x32xf32>
    %211 = arith.addf %210, %209 : vector<1x32xf32>
    %212 = arith.divf %210, %211 : vector<1x32xf32>
    %213 = vector.extract_strided_slice %206 {offsets = [0, 32], sizes = [1, 32], strides = [1, 1]} : vector<1x128xf32> to vector<1x32xf32>
    %214 = arith.negf %213 : vector<1x32xf32>
    %215 = math.exp %214 : vector<1x32xf32>
    %cst_50 = arith.constant 1.000000e+00 : f32
    %216 = vector.broadcast %cst_50 : f32 to vector<1x32xf32>
    %217 = arith.addf %216, %215 : vector<1x32xf32>
    %218 = arith.divf %216, %217 : vector<1x32xf32>
    %219 = vector.extract_strided_slice %206 {offsets = [0, 64], sizes = [1, 32], strides = [1, 1]} : vector<1x128xf32> to vector<1x32xf32>
    %220 = math.tanh %219 : vector<1x32xf32>
    %221 = vector.extract_strided_slice %206 {offsets = [0, 96], sizes = [1, 32], strides = [1, 1]} : vector<1x128xf32> to vector<1x32xf32>
    %222 = arith.negf %221 : vector<1x32xf32>
    %223 = math.exp %222 : vector<1x32xf32>
    %cst_51 = arith.constant 1.000000e+00 : f32
    %224 = vector.broadcast %cst_51 : f32 to vector<1x32xf32>
    %225 = arith.addf %224, %223 : vector<1x32xf32>
    %226 = arith.divf %224, %225 : vector<1x32xf32>
    %227 = arith.mulf %218, %197 : vector<1x32xf32>
    %228 = arith.mulf %212, %220 : vector<1x32xf32>
    %229 = arith.addf %227, %228 : vector<1x32xf32>
    %230 = math.tanh %229 : vector<1x32xf32>
    %231 = arith.mulf %226, %230 : vector<1x32xf32>
    %232 = arith.index_cast %c6_i32 : i32 to index
    %c0_52 = arith.constant 0 : index
    %233 = vector.load %arg8[%232, %c0_52] : memref<8x32xf32, #tpu.memory_space<vmem>>, vector<1x32xf32>
    tpu.vector_store %arg8[%232, %c0_52], %231 {strides = array<i32>} : memref<8x32xf32, #tpu.memory_space<vmem>>, vector<1x32xf32>,
    %c7_i32 = arith.constant 7 : i32
    %234 = arith.index_cast %c7_i32 : i32 to index
    %c0_53 = arith.constant 0 : index
    %235 = vector.load %arg7[%234, %c0_53] : memref<8x128xf32, #tpu.memory_space<vmem>>, vector<1x128xf32>
    %236 = arith.truncf %231 : vector<1x32xf32> to vector<1x32xbf16>
    %cst_54 = arith.constant dense<0.000000e+00> : vector<1x128xf32>
    %237 = tpu.matmul %236, %7, %cst_54 {dimension_numbers = #tpu.dot_dimension_numbers<[1], [0], [0], [1], [0, 0, 1, 1], [], []>} : vector<1x32xbf16>, vector<32x128xbf16>, vector<1x128xf32> -> vector<1x128xf32>
    %238 = arith.addf %235, %237 : vector<1x128xf32>
    %239 = vector.extract_strided_slice %238 {offsets = [0, 0], sizes = [1, 32], strides = [1, 1]} : vector<1x128xf32> to vector<1x32xf32>
    %240 = arith.negf %239 : vector<1x32xf32>
    %241 = math.exp %240 : vector<1x32xf32>
    %cst_55 = arith.constant 1.000000e+00 : f32
    %242 = vector.broadcast %cst_55 : f32 to vector<1x32xf32>
    %243 = arith.addf %242, %241 : vector<1x32xf32>
    %244 = arith.divf %242, %243 : vector<1x32xf32>
    %245 = vector.extract_strided_slice %238 {offsets = [0, 32], sizes = [1, 32], strides = [1, 1]} : vector<1x128xf32> to vector<1x32xf32>
    %246 = arith.negf %245 : vector<1x32xf32>
    %247 = math.exp %246 : vector<1x32xf32>
    %cst_56 = arith.constant 1.000000e+00 : f32
    %248 = vector.broadcast %cst_56 : f32 to vector<1x32xf32>
    %249 = arith.addf %248, %247 : vector<1x32xf32>
    %250 = arith.divf %248, %249 : vector<1x32xf32>
    %251 = vector.extract_strided_slice %238 {offsets = [0, 64], sizes = [1, 32], strides = [1, 1]} : vector<1x128xf32> to vector<1x32xf32>
    %252 = math.tanh %251 : vector<1x32xf32>
    %253 = vector.extract_strided_slice %238 {offsets = [0, 96], sizes = [1, 32], strides = [1, 1]} : vector<1x128xf32> to vector<1x32xf32>
    %254 = arith.negf %253 : vector<1x32xf32>
    %255 = math.exp %254 : vector<1x32xf32>
    %cst_57 = arith.constant 1.000000e+00 : f32
    %256 = vector.broadcast %cst_57 : f32 to vector<1x32xf32>
    %257 = arith.addf %256, %255 : vector<1x32xf32>
    %258 = arith.divf %256, %257 : vector<1x32xf32>
    %259 = arith.mulf %250, %229 : vector<1x32xf32>
    %260 = arith.mulf %244, %252 : vector<1x32xf32>
    %261 = arith.addf %259, %260 : vector<1x32xf32>
    %262 = math.tanh %261 : vector<1x32xf32>
    %263 = arith.mulf %258, %262 : vector<1x32xf32>
    %264 = arith.index_cast %c7_i32 : i32 to index
    %c0_58 = arith.constant 0 : index
    %265 = vector.load %arg8[%264, %c0_58] : memref<8x32xf32, #tpu.memory_space<vmem>>, vector<1x32xf32>
    tpu.vector_store %arg8[%264, %c0_58], %263 {strides = array<i32>} : memref<8x32xf32, #tpu.memory_space<vmem>>, vector<1x32xf32>,
    %c8_i32 = arith.constant 8 : i32
    %c0_59 = arith.constant 0 : index
    %c0_60 = arith.constant 0 : index
    %266 = vector.load %arg8[%c0_59, %c0_60] : memref<8x32xf32, #tpu.memory_space<vmem>>, vector<8x32xf32>
    %267 = arith.truncf %266 : vector<8x32xf32> to vector<8x32xbf16>
    %c0_61 = arith.constant 0 : index
    %c0_62 = arith.constant 0 : index
    %268 = vector.load %arg4[%c0_61, %c0_62] : memref<32x128xbf16, #tpu.memory_space<vmem>>, vector<32x128xbf16>
    %cst_63 = arith.constant dense<0.000000e+00> : vector<8x128xf32>
    %269 = tpu.matmul %267, %268, %cst_63 {dimension_numbers = #tpu.dot_dimension_numbers<[1], [0], [0], [1], [0, 0, 1, 1], [], []>} : vector<8x32xbf16>, vector<32x128xbf16>, vector<8x128xf32> -> vector<8x128xf32>
    %c0_64 = arith.constant 0 : index
    %c0_65 = arith.constant 0 : index
    %270 = vector.load %arg5[%c0_64, %c0_65] : memref<1x128xf32, #tpu.memory_space<vmem>>, vector<1x128xf32>
    %271 = vector.broadcast %270 : vector<1x128xf32> to vector<8x128xf32>
    %272 = arith.addf %269, %271 : vector<8x128xf32>
    %cst_66 = arith.constant dense<0xFF800000> : vector<8xf32>
    %273 = vector.multi_reduction <maximumf>, %272, %cst_66 [1] : vector<8x128xf32> to vector<8xf32>
    %274 = vector.shape_cast %273 : vector<8xf32> to vector<8x1xf32>
    %275 = vector.broadcast %274 : vector<8x1xf32> to vector<8x128xf32>
    %276 = arith.subf %272, %275 : vector<8x128xf32>
    %277 = math.exp %276 : vector<8x128xf32>
    %cst_67 = arith.constant dense<0.000000e+00> : vector<8xf32>
    %278 = vector.multi_reduction <add>, %277, %cst_67 [1] : vector<8x128xf32> to vector<8xf32>
    %279 = vector.shape_cast %278 : vector<8xf32> to vector<8x1xf32>
    %280 = math.log %279 : vector<8x1xf32>
    %281 = vector.broadcast %280 : vector<8x1xf32> to vector<8x128xf32>
    %282 = arith.subf %276, %281 : vector<8x128xf32>
    %c0_68 = arith.constant 0 : index
    %c0_69 = arith.constant 0 : index
    %283 = vector.load %arg6[%c0_68, %c0_69] : memref<8x128xf32, #tpu.memory_space<vmem>>, vector<8x128xf32>
    tpu.vector_store %arg6[%c0_68, %c0_69], %282 {strides = array<i32>} : memref<8x128xf32, #tpu.memory_space<vmem>>, vector<8x128xf32>,
    return
  }
}

</mosaic_0001>

<llo_original>
// kernel: tpu_custom_call.1
$region0: #{tpu_custom_call.1}
  #allocation0 [shape = 'u32[]', space=smem, size = 0x4, offset = 0x4, fixed_abs, tag = 'smem constant byte address 0x4 - core index']
  #allocation1 [shape = 'u32[144,128]{1,0:T(1,128)}', space=vmem, size = 0x12000, scoped, tag = 'internal scratch']
  #allocation2 [shape = 'f32[8,128]{1,0:T(8,128)}', space=vmem, size = 0x1000, scoped, tag = 'scratch operand']
  #allocation3 [shape = 'f32[8,32]{1,0:T(8,128)}', space=vmem, size = 0x1000, scoped, tag = 'scratch operand']
  %s0 = inlined_call_operand.hbm [shape: bf16[8,32], index: 0, kind: input, shape index: {}]
  %s1 = inlined_call_operand.hbm [shape: bf16[32,128], index: 1, kind: input, shape index: {}]
  %s2 = inlined_call_operand.hbm [shape: bf16[32,128], index: 2, kind: input, shape index: {}]
  %s3 = inlined_call_operand.vmem [shape: f32[1,128], index: 3, kind: input, shape index: {}]
  %s4 = inlined_call_operand.hbm [shape: bf16[32,128], index: 4, kind: input, shape index: {}]
  %s5 = inlined_call_operand.vmem [shape: f32[1,128], index: 5, kind: input, shape index: {}]
  %s6 = inlined_call_operand.hbm [shape: f32[8,128], index: 6, kind: output, shape index: {}]
  %s7 = sld [smem:[#allocation0]]
  $region50: #{tpu_custom_call.1} parent=0
    _
  %s9 = ssub.s32 1, %s7
  %s10 = scalar_select 0, %s9, %s7
  $region1: #{tpu_custom_call.1} parent=0
    #allocation4 [shape = 'u8[2048]{0}', space=vmem, size = 0x800, scoped, tag = 'input window, operand 0, single buffered']
    #allocation5 [shape = 's32[1]{0}', space=sflag, size = 0x4, scoped, tag = 'scoped memory for tpu_custom_call.1']
    #allocation6 [shape = 's32[1]{0}', space=sflag, size = 0x4, scoped, tag = 'scoped memory for tpu_custom_call.1']
    #allocation7 [shape = 'u8[8192]{0}', space=vmem, size = 0x2000, scoped, tag = 'input window, operand 1, single buffered']
    #allocation8 [shape = 's32[1]{0}', space=sflag, size = 0x4, scoped, tag = 'scoped memory for tpu_custom_call.1']
    #allocation9 [shape = 'u8[8192]{0}', space=vmem, size = 0x2000, scoped, tag = 'input window, operand 2, single buffered']
    #allocation10 [shape = 'u8[8192]{0}', space=vmem, size = 0x2000, scoped, tag = 'input window, operand 4, single buffered']
    #allocation11 [shape = 's32[1]{0}', space=sflag, size = 0x4, scoped, tag = 'scoped memory for tpu_custom_call.1']
    #allocation12 [shape = 'u8[4096]{0}', space=vmem, size = 0x1000, scoped, tag = 'output window, operand 0, single buffered']
    %11 = vsyncpa [#allocation5], 0
    %12 = vsyncpa [#allocation8], 0
    %13 = vsyncpa [#allocation11], 0
    %14 = vsyncpa [#allocation6], 0
    // Predicated region
    $region2: #{tpu_custom_call.1} parent=1 // pred_check
      _
    $region3: #{tpu_custom_call.1} parent=1 // pred_check_branch
      %16 = sbr.rel (0) target = $region5
    $region4: #{tpu_custom_call.1} parent=1 // pred_region
      %s18 = ssub.s32 64, 64
      %19 = vsyncadd [#allocation5], %s18
      %s21 = sshll.u32 [#allocation4], 4
      %s22 = int_to_ptr.vmem [resolvable:$true] %s21
      %24 = dma.hbm_to_vmem [thread:$0]  %s0, 64, %s22, [#allocation5]
    $region5: #{tpu_custom_call.1} parent=1 // pred_fallthru
      _
    // Predicated region
    $region6: #{tpu_custom_call.1} parent=1 // pred_check
      _
    $region7: #{tpu_custom_call.1} parent=1 // pred_check_branch
      %26 = sbr.rel (0) target = $region9
    $region8: #{tpu_custom_call.1} parent=1 // pred_region
      %s28 = ssub.s32 256, 256
      %29 = vsyncadd [#allocation8], %s28
      %s30 = sshll.u32 [#allocation7], 4
      %s31 = int_to_ptr.vmem [resolvable:$true] %s30
      %36 = dma.hbm_to_vmem [thread:$0]  %s1, 256, %s31, [#allocation8], 64, 64, 4
    $region9: #{tpu_custom_call.1} parent=1 // pred_fallthru
      _
    // Predicated region
    $region10: #{tpu_custom_call.1} parent=1 // pred_check
      _
    $region11: #{tpu_custom_call.1} parent=1 // pred_check_branch
      %38 = sbr.rel (0) target = $region13
    $region12: #{tpu_custom_call.1} parent=1 // pred_region
      %s40 = ssub.s32 256, 256
      %41 = vsyncadd [#allocation8], %s40
      %s42 = sshll.u32 [#allocation9], 4
      %s43 = int_to_ptr.vmem [resolvable:$true] %s42
      %48 = dma.hbm_to_vmem [thread:$0]  %s2, 256, %s43, [#allocation8], 64, 64, 4
    $region13: #{tpu_custom_call.1} parent=1 // pred_fallthru
      _
    // Predicated region
    $region14: #{tpu_custom_call.1} parent=1 // pred_check
      _
    $region15: #{tpu_custom_call.1} parent=1 // pred_check_branch
      %50 = sbr.rel (0) target = $region17
    $region16: #{tpu_custom_call.1} parent=1 // pred_region
      _
    $region17: #{tpu_custom_call.1} parent=1 // pred_fallthru
      _
    // Predicated region
    $region18: #{tpu_custom_call.1} parent=1 // pred_check
      _
    $region19: #{tpu_custom_call.1} parent=1 // pred_check_branch
      %52 = sbr.rel (0) target = $region21
    $region20: #{tpu_custom_call.1} parent=1 // pred_region
      %s54 = ssub.s32 256, 256
      %55 = vsyncadd [#allocation11], %s54
      %s56 = sshll.u32 [#allocation10], 4
      %s57 = int_to_ptr.vmem [resolvable:$true] %s56
      %62 = dma.hbm_to_vmem [thread:$0]  %s4, 256, %s57, [#allocation11], 64, 64, 4
    $region21: #{tpu_custom_call.1} parent=1 // pred_fallthru
      _
    // Predicated region
    $region22: #{tpu_custom_call.1} parent=1 // pred_check
      _
    $region23: #{tpu_custom_call.1} parent=1 // pred_check_branch
      %64 = sbr.rel (0) target = $region25
    $region24: #{tpu_custom_call.1} parent=1 // pred_region
      _
    $region25: #{tpu_custom_call.1} parent=1 // pred_fallthru
      _
    // Predicated region
    $region26: #{tpu_custom_call.1} parent=1 // pred_check
      _
    $region27: #{tpu_custom_call.1} parent=1 // pred_check_branch
      %66 = sbr.rel (0) target = $region29
    $region28: #{tpu_custom_call.1} parent=1 // pred_region
      %67 = dma.done [#allocation5], 64
    $region29: #{tpu_custom_call.1} parent=1 // pred_fallthru
      _
    // Predicated region
    $region30: #{tpu_custom_call.1} parent=1 // pred_check
      _
    $region31: #{tpu_custom_call.1} parent=1 // pred_check_branch
      %69 = sbr.rel (0) target = $region33
    $region32: #{tpu_custom_call.1} parent=1 // pred_region
      %70 = dma.done [#allocation8], 256
    $region33: #{tpu_custom_call.1} parent=1 // pred_fallthru
      _
    // Predicated region
    $region34: #{tpu_custom_call.1} parent=1 // pred_check
      _
    $region35: #{tpu_custom_call.1} parent=1 // pred_check_branch
      %72 = sbr.rel (0) target = $region37
    $region36: #{tpu_custom_call.1} parent=1 // pred_region
      %73 = dma.done [#allocation8], 256
    $region37: #{tpu_custom_call.1} parent=1 // pred_fallthru
      _
    // Predicated region
    $region38: #{tpu_custom_call.1} parent=1 // pred_check
      _
    $region39: #{tpu_custom_call.1} parent=1 // pred_check_branch
      %75 = sbr.rel (0) target = $region41
    $region40: #{tpu_custom_call.1} parent=1 // pred_region
      %76 = dma.done [#allocation11], 256
    $region41: #{tpu_custom_call.1} parent=1 // pred_fallthru
      _
    %v78 = vld [vmem:[#allocation4] sm:$0xf]
    %v79 = vld [vmem:[#allocation7] sm:$0xf]
    %v80 = vld [vmem:[#allocation7 + $0x4] sm:$0xf]
    %v81 = vld [vmem:[#allocation7 + $0x8] sm:$0xf]
    %v82 = vld [vmem:[#allocation7 + $0xc] sm:$0xf]
    %v83 = vld [vmem:[%s3] sm:$0x1]
    %v85 = vlaneseq
    %v86 = vshrl.u32 %v85, 7
    %v87 = vsub.s32 0, %v86
    %v88 = vrot.slane %v83, %v87
    %v94 = vunpack.c.l.b16 %v79
    %v95 = vunpack.c.l.b16 %v80
    %v96 = vunpack.c.l.b16 %v81
    %v97 = vunpack.c.l.b16 %v82
    %v98 = vpack.c.b16 %v95, %v94
    %v99 = vpack.c.b16 %v97, %v96
    %vm102 = vcmask 261120
    %v104 = vsel %vm102, %v78, 0
    %106 = vmatprep.subr.bf16.mxu0 0
    %107 = vmatpush1.bf16.msra.mxu0 %v98
    %108 = vmatprep.subr.bf16.mxu0 0
    %109 = vmatpush1.bf16.msra.mxu0 %v99
    %110 = vmatprep.subr.bf16.mxu0 0
    %111 = vmatpush1.bf16.msra.mxu0 0
    %112 = vmatprep.subr.bf16.mxu0 0
    %113 = vmatpush1.bf16.msra.mxu0 0
    %114 = vmatprep.subr.bf16.mxu0 0
    %115 = vmatpush1.bf16.msra.mxu0 0
    %116 = vmatprep.subr.bf16.mxu0 0
    %117 = vmatpush1.bf16.msra.mxu0 0
    %118 = vmatprep.subr.bf16.mxu0 0
    %119 = vmatpush1.bf16.msra.mxu0 0
    %120 = vmatprep.subr.bf16.mxu0 0
    %121 = vmatpush1.bf16.msra.mxu0 0
    %122 = vmatprep.subr.bf16.mxu0 0
    %123 = vmatpush1.bf16.msra.mxu0 0
    %124 = vmatprep.subr.bf16.mxu0 0
    %125 = vmatpush1.bf16.msra.mxu0 0
    %126 = vmatprep.subr.bf16.mxu0 0
    %127 = vmatpush1.bf16.msra.mxu0 0
    %128 = vmatprep.subr.bf16.mxu0 0
    %129 = vmatpush1.bf16.msra.mxu0 0
    %130 = vmatprep.subr.bf16.mxu0 0
    %131 = vmatpush1.bf16.msra.mxu0 0
    %132 = vmatprep.subr.bf16.mxu0 0
    %133 = vmatpush1.bf16.msra.mxu0 0
    %134 = vmatprep.subr.bf16.mxu0 0
    %135 = vmatpush1.bf16.msra.mxu0 0
    %136 = vmatprep.subr.bf16.mxu0 0
    %137 = vmatpush1.bf16.msra.mxu0 0
    %138 = vmatprep.mubr.bf16.mxu0 0
    %139 = vmatmul.mubr.bf16.gmra.mrb[0].mxu0 %v104
    %v140 = vpop.f32.mrb[0].mxu0
    %v141 = vadd.f32 %v88, %v140
    %v142 = vpop.f32.mrb[0].mxu0
    %v143 = vpop.f32.mrb[0].mxu0
    %v144 = vpop.f32.mrb[0].mxu0
    %145 = vdwg.mxu0
    %146 = vst [vmem:[#allocation2] sm:$0xff] %v141
    %v147 = vld [vmem:[#allocation9] sm:$0xf]
    %v148 = vld [vmem:[#allocation9 + $0x4] sm:$0xf]
    %v149 = vld [vmem:[#allocation9 + $0x8] sm:$0xf]
    %v150 = vld [vmem:[#allocation9 + $0xc] sm:$0xf]
    %v151 = vld [vmem:[#allocation2] sm:$0x1]
    %v156 = vunpack.c.l.b16 %v147
    %v157 = vunpack.c.l.b16 %v148
    %v158 = vunpack.c.l.b16 %v149
    %v159 = vunpack.c.l.b16 %v150
    %v160 = vpack.c.b16 %v157, %v156
    %v161 = vpack.c.b16 %v159, %v158
    %v165 = vsel %vm102, 0, 0
    %167 = vmatprep.subr.bf16.mxu0 0
    %168 = vmatpush1.bf16.msra.mxu0 %v160
    %169 = vmatprep.subr.bf16.mxu0 0
    %170 = vmatpush1.bf16.msra.mxu0 %v161
    %171 = vmatprep.subr.bf16.mxu0 0
    %172 = vmatpush1.bf16.msra.mxu0 0
    %173 = vmatprep.subr.bf16.mxu0 0
    %174 = vmatpush1.bf16.msra.mxu0 0
    %175 = vmatprep.subr.bf16.mxu0 0
    %176 = vmatpush1.bf16.msra.mxu0 0
    %177 = vmatprep.subr.bf16.mxu0 0
    %178 = vmatpush1.bf16.msra.mxu0 0
    %179 = vmatprep.subr.bf16.mxu0 0
    %180 = vmatpush1.bf16.msra.mxu0 0
    %181 = vmatprep.subr.bf16.mxu0 0
    %182 = vmatpush1.bf16.msra.mxu0 0
    %183 = vmatprep.subr.bf16.mxu0 0
    %184 = vmatpush1.bf16.msra.mxu0 0
    %185 = vmatprep.subr.bf16.mxu0 0
    %186 = vmatpush1.bf16.msra.mxu0 0
    %187 = vmatprep.subr.bf16.mxu0 0
    %188 = vmatpush1.bf16.msra.mxu0 0
    %189 = vmatprep.subr.bf16.mxu0 0
    %190 = vmatpush1.bf16.msra.mxu0 0
    %191 = vmatprep.subr.bf16.mxu0 0
    %192 = vmatpush1.bf16.msra.mxu0 0
    %193 = vmatprep.subr.bf16.mxu0 0
    %194 = vmatpush1.bf16.msra.mxu0 0
    %195 = vmatprep.subr.bf16.mxu0 0
    %196 = vmatpush1.bf16.msra.mxu0 0
    %197 = vmatprep.subr.bf16.mxu0 0
    %198 = vmatpush1.bf16.msra.mxu0 0
    %199 = vmatprep.mubr.bf16.mxu0 0
    %200 = vmatmul.mubr.bf16.gmra.mrb[0].mxu0 %v165
    %v201 = vpop.f32.mrb[0].mxu0
    %v202 = vadd.f32 0.0, %v201
    %v203 = vpop.f32.mrb[0].mxu0
    %v204 = vpop.f32.mrb[0].mxu0
    %v205 = vpop.f32.mrb[0].mxu0
    %206 = vdwg.mxu0
    %v207 = vadd.f32 %v151, %v202
    %v208 = vxor.u32 %v207, 2147483648
    %v209 = vmul.f32 %v208, 1.442695
    %v210 = vpow.pop %v209
    %v211 = vadd.f32 %v210, 1.0
    %v212 = vrcp.pop %v211
    %v213 = vmul.f32 1.0, %v212
    %v214 = vtanh.pop %v207
    %v215 = vmul.f32 %v213, 0.0
    %217 = vrot.lane.b32.xlu0 %v214, 64
    %v218 = vpop.permute.xlu0 %217
    %v220 = vmul.f32 %v213, %v218
    %222 = vrot.lane.b32.xlu0 %v220, 32
    %v223 = vpop.permute.xlu0 %222
    %v225 = vadd.f32 %v215, %v223
    %v226 = vtanh.pop %v225
    %228 = vrot.lane.b32.xlu0 %v226, 64
    %v229 = vpop.permute.xlu0 %228
    %v231 = vmul.f32 %v213, %v229
    %233 = vrot.lane.b32.xlu0 %v231, 32
    %v234 = vpop.permute.xlu0 %233
    %vm236 = vcmask 253952
    %237 = vst.msk [vmem:[#allocation3] sm:$0x1] %vm236, %v234
    %v238 = vld [vmem:[#allocation2 + $0x1] sm:$0x1]
    %v239 = vpack.c.bf16 %v231, %v231
    %241 = vrot.lane.b32.xlu0 %v239, 32
    %v242 = vpop.permute.xlu0 %241
    %v244 = vsel %vm102, %v242, 0
    %246 = vmatprep.subr.bf16.mxu0 0
    %247 = vmatpush1.bf16.msra.mxu0 %v160
    %248 = vmatprep.subr.bf16.mxu0 0
    %249 = vmatpush1.bf16.msra.mxu0 %v161
    %250 = vmatprep.subr.bf16.mxu0 0
    %251 = vmatpush1.bf16.msra.mxu0 0
    %252 = vmatprep.subr.bf16.mxu0 0
    %253 = vmatpush1.bf16.msra.mxu0 0
    %254 = vmatprep.subr.bf16.mxu0 0
    %255 = vmatpush1.bf16.msra.mxu0 0
    %256 = vmatprep.subr.bf16.mxu0 0
    %257 = vmatpush1.bf16.msra.mxu0 0
    %258 = vmatprep.subr.bf16.mxu0 0
    %259 = vmatpush1.bf16.msra.mxu0 0
    %260 = vmatprep.subr.bf16.mxu0 0
    %261 = vmatpush1.bf16.msra.mxu0 0
    %262 = vmatprep.subr.bf16.mxu0 0
    %263 = vmatpush1.bf16.msra.mxu0 0
    %264 = vmatprep.subr.bf16.mxu0 0
    %265 = vmatpush1.bf16.msra.mxu0 0
    %266 = vmatprep.subr.bf16.mxu0 0
    %267 = vmatpush1.bf16.msra.mxu0 0
    %268 = vmatprep.subr.bf16.mxu0 0
    %269 = vmatpush1.bf16.msra.mxu0 0
    %270 = vmatprep.subr.bf16.mxu0 0
    %271 = vmatpush1.bf16.msra.mxu0 0
    %272 = vmatprep.subr.bf16.mxu0 0
    %273 = vmatpush1.bf16.msra.mxu0 0
    %274 = vmatprep.subr.bf16.mxu0 0
    %275 = vmatpush1.bf16.msra.mxu0 0
    %276 = vmatprep.subr.bf16.mxu0 0
    %277 = vmatpush1.bf16.msra.mxu0 0
    %278 = vmatprep.mubr.bf16.mxu0 0
    %279 = vmatmul.mubr.bf16.gmra.mrb[0].mxu0 %v244
    %v280 = vpop.f32.mrb[0].mxu0
    %v281 = vadd.f32 0.0, %v280
    %v282 = vpop.f32.mrb[0].mxu0
    %v283 = vpop.f32.mrb[0].mxu0
    %v284 = vpop.f32.mrb[0].mxu0
    %285 = vdwg.mxu0
    %v286 = vadd.f32 %v238, %v281
    %v287 = vxor.u32 %v286, 2147483648
    %v288 = vmul.f32 %v287, 1.442695
    %v289 = vpow.pop %v288
    %v290 = vadd.f32 %v289, 1.0
    %v291 = vrcp.pop %v290
    %v292 = vmul.f32 1.0, %v291
    %v293 = vtanh.pop %v286
    %v294 = vmul.f32 %v292, %v225
    %296 = vrot.lane.b32.xlu0 %v293, 64
    %v297 = vpop.permute.xlu0 %296
    %v299 = vmul.f32 %v292, %v297
    %301 = vrot.lane.b32.xlu0 %v299, 32
    %v302 = vpop.permute.xlu0 %301
    %v304 = vadd.f32 %v294, %v302
    %v305 = vtanh.pop %v304
    %307 = vrot.lane.b32.xlu0 %v305, 64
    %v308 = vpop.permute.xlu0 %307
    %v310 = vmul.f32 %v292, %v308
    %312 = vrot.lane.b32.xlu0 %v310, 32
    %v313 = vpop.permute.xlu0 %312
    %315 = vst.msk [vmem:[#allocation3 + $0x1] sm:$0x1] %vm236, %v313
    %v316 = vld [vmem:[#allocation2 + $0x2] sm:$0x1]
    %v317 = vpack.c.bf16 %v310, %v310
    %319 = vrot.lane.b32.xlu0 %v317, 32
    %v320 = vpop.permute.xlu0 %319
    %v322 = vsel %vm102, %v320, 0
    %324 = vmatprep.subr.bf16.mxu0 0
    %325 = vmatpush1.bf16.msra.mxu0 %v160
    %326 = vmatprep.subr.bf16.mxu0 0
    %327 = vmatpush1.bf16.msra.mxu0 %v161
    %328 = vmatprep.subr.bf16.mxu0 0
    %329 = vmatpush1.bf16.msra.mxu0 0
    %330 = vmatprep.subr.bf16.mxu0 0
    %331 = vmatpush1.bf16.msra.mxu0 0
    %332 = vmatprep.subr.bf16.mxu0 0
    %333 = vmatpush1.bf16.msra.mxu0 0
    %334 = vmatprep.subr.bf16.mxu0 0
    %335 = vmatpush1.bf16.msra.mxu0 0
    %336 = vmatprep.subr.bf16.mxu0 0
    %337 = vmatpush1.bf16.msra.mxu0 0
    %338 = vmatprep.subr.bf16.mxu0 0
    %339 = vmatpush1.bf16.msra.mxu0 0
    %340 = vmatprep.subr.bf16.mxu0 0
    %341 = vmatpush1.bf16.msra.mxu0 0
    %342 = vmatprep.subr.bf16.mxu0 0
    %343 = vmatpush1.bf16.msra.mxu0 0
    %344 = vmatprep.subr.bf16.mxu0 0
    %345 = vmatpush1.bf16.msra.mxu0 0
    %346 = vmatprep.subr.bf16.mxu0 0
    %347 = vmatpush1.bf16.msra.mxu0 0
    %348 = vmatprep.subr.bf16.mxu0 0
    %349 = vmatpush1.bf16.msra.mxu0 0
    %350 = vmatprep.subr.bf16.mxu0 0
    %351 = vmatpush1.bf16.msra.mxu0 0
    %352 = vmatprep.subr.bf16.mxu0 0
    %353 = vmatpush1.bf16.msra.mxu0 0
    %354 = vmatprep.subr.bf16.mxu0 0
    %355 = vmatpush1.bf16.msra.mxu0 0
    %356 = vmatprep.mubr.bf16.mxu0 0
    %357 = vmatmul.mubr.bf16.gmra.mrb[0].mxu0 %v322
    %v358 = vpop.f32.mrb[0].mxu0
    %v359 = vadd.f32 0.0, %v358
    %v360 = vpop.f32.mrb[0].mxu0
    %v361 = vpop.f32.mrb[0].mxu0
    %v362 = vpop.f32.mrb[0].mxu0
    %363 = vdwg.mxu0
    %v364 = vadd.f32 %v316, %v359
    %v365 = vxor.u32 %v364, 2147483648
    %v366 = vmul.f32 %v365, 1.442695
    %v367 = vpow.pop %v366
    %v368 = vadd.f32 %v367, 1.0
    %v369 = vrcp.pop %v368
    %v370 = vmul.f32 1.0, %v369
    %v371 = vtanh.pop %v364
    %v372 = vmul.f32 %v370, %v304
    %374 = vrot.lane.b32.xlu0 %v371, 64
    %v375 = vpop.permute.xlu0 %374
    %v377 = vmul.f32 %v370, %v375
    %379 = vrot.lane.b32.xlu0 %v377, 32
    %v380 = vpop.permute.xlu0 %379
    %v382 = vadd.f32 %v372, %v380
    %v383 = vtanh.pop %v382
    %385 = vrot.lane.b32.xlu0 %v383, 64
    %v386 = vpop.permute.xlu0 %385
    %v388 = vmul.f32 %v370, %v386
    %390 = vrot.lane.b32.xlu0 %v388, 32
    %v391 = vpop.permute.xlu0 %390
    %393 = vst.msk [vmem:[#allocation3 + $0x2] sm:$0x1] %vm236, %v391
    %v394 = vld [vmem:[#allocation2 + $0x3] sm:$0x1]
    %v395 = vpack.c.bf16 %v388, %v388
    %397 = vrot.lane.b32.xlu0 %v395, 32
    %v398 = vpop.permute.xlu0 %397
    %v400 = vsel %vm102, %v398, 0
    %402 = vmatprep.subr.bf16.mxu0 0
    %403 = vmatpush1.bf16.msra.mxu0 %v160
    %404 = vmatprep.subr.bf16.mxu0 0
    %405 = vmatpush1.bf16.msra.mxu0 %v161
    %406 = vmatprep.subr.bf16.mxu0 0
    %407 = vmatpush1.bf16.msra.mxu0 0
    %408 = vmatprep.subr.bf16.mxu0 0
    %409 = vmatpush1.bf16.msra.mxu0 0
    %410 = vmatprep.subr.bf16.mxu0 0
    %411 = vmatpush1.bf16.msra.mxu0 0
    %412 = vmatprep.subr.bf16.mxu0 0
    %413 = vmatpush1.bf16.msra.mxu0 0
    %414 = vmatprep.subr.bf16.mxu0 0
    %415 = vmatpush1.bf16.msra.mxu0 0
    %416 = vmatprep.subr.bf16.mxu0 0
    %417 = vmatpush1.bf16.msra.mxu0 0
    %418 = vmatprep.subr.bf16.mxu0 0
    %419 = vmatpush1.bf16.msra.mxu0 0
    %420 = vmatprep.subr.bf16.mxu0 0
    %421 = vmatpush1.bf16.msra.mxu0 0
    %422 = vmatprep.subr.bf16.mxu0 0
    %423 = vmatpush1.bf16.msra.mxu0 0
    %424 = vmatprep.subr.bf16.mxu0 0
    %425 = vmatpush1.bf16.msra.mxu0 0
    %426 = vmatprep.subr.bf16.mxu0 0
    %427 = vmatpush1.bf16.msra.mxu0 0
    %428 = vmatprep.subr.bf16.mxu0 0
    %429 = vmatpush1.bf16.msra.mxu0 0
    %430 = vmatprep.subr.bf16.mxu0 0
    %431 = vmatpush1.bf16.msra.mxu0 0
    %432 = vmatprep.subr.bf16.mxu0 0
    %433 = vmatpush1.bf16.msra.mxu0 0
    %434 = vmatprep.mubr.bf16.mxu0 0
    %435 = vmatmul.mubr.bf16.gmra.mrb[0].mxu0 %v400
    %v436 = vpop.f32.mrb[0].mxu0
    %v437 = vadd.f32 0.0, %v436
    %v438 = vpop.f32.mrb[0].mxu0
    %v439 = vpop.f32.mrb[0].mxu0
    %v440 = vpop.f32.mrb[0].mxu0
    %441 = vdwg.mxu0
    %v442 = vadd.f32 %v394, %v437
    %v443 = vxor.u32 %v442, 2147483648
    %v444 = vmul.f32 %v443, 1.442695
    %v445 = vpow.pop %v444
    %v446 = vadd.f32 %v445, 1.0
    %v447 = vrcp.pop %v446
    %v448 = vmul.f32 1.0, %v447
    %v449 = vtanh.pop %v442
    %v450 = vmul.f32 %v448, %v382
    %452 = vrot.lane.b32.xlu0 %v449, 64
    %v453 = vpop.permute.xlu0 %452
    %v455 = vmul.f32 %v448, %v453
    %457 = vrot.lane.b32.xlu0 %v455, 32
    %v458 = vpop.permute.xlu0 %457
    %v460 = vadd.f32 %v450, %v458
    %v461 = vtanh.pop %v460
    %463 = vrot.lane.b32.xlu0 %v461, 64
    %v464 = vpop.permute.xlu0 %463
    %v466 = vmul.f32 %v448, %v464
    %468 = vrot.lane.b32.xlu0 %v466, 32
    %v469 = vpop.permute.xlu0 %468
    %471 = vst.msk [vmem:[#allocation3 + $0x3] sm:$0x1] %vm236, %v469
    %v472 = vld [vmem:[#allocation2 + $0x4] sm:$0x1]
    %v473 = vpack.c.bf16 %v466, %v466
    %475 = vrot.lane.b32.xlu0 %v473, 32
    %v476 = vpop.permute.xlu0 %475
    %v478 = vsel %vm102, %v476, 0
    %480 = vmatprep.subr.bf16.mxu0 0
    %481 = vmatpush1.bf16.msra.mxu0 %v160
    %482 = vmatprep.subr.bf16.mxu0 0
    %483 = vmatpush1.bf16.msra.mxu0 %v161
    %484 = vmatprep.subr.bf16.mxu0 0
    %485 = vmatpush1.bf16.msra.mxu0 0
    %486 = vmatprep.subr.bf16.mxu0 0
    %487 = vmatpush1.bf16.msra.mxu0 0
    %488 = vmatprep.subr.bf16.mxu0 0
    %489 = vmatpush1.bf16.msra.mxu0 0
    %490 = vmatprep.subr.bf16.mxu0 0
    %491 = vmatpush1.bf16.msra.mxu0 0
    %492 = vmatprep.subr.bf16.mxu0 0
    %493 = vmatpush1.bf16.msra.mxu0 0
    %494 = vmatprep.subr.bf16.mxu0 0
    %495 = vmatpush1.bf16.msra.mxu0 0
    %496 = vmatprep.subr.bf16.mxu0 0
    %497 = vmatpush1.bf16.msra.mxu0 0
    %498 = vmatprep.subr.bf16.mxu0 0
    %499 = vmatpush1.bf16.msra.mxu0 0
    %500 = vmatprep.subr.bf16.mxu0 0
    %501 = vmatpush1.bf16.msra.mxu0 0
    %502 = vmatprep.subr.bf16.mxu0 0
    %503 = vmatpush1.bf16.msra.mxu0 0
    %504 = vmatprep.subr.bf16.mxu0 0
    %505 = vmatpush1.bf16.msra.mxu0 0
    %506 = vmatprep.subr.bf16.mxu0 0
    %507 = vmatpush1.bf16.msra.mxu0 0
    %508 = vmatprep.subr.bf16.mxu0 0
    %509 = vmatpush1.bf16.msra.mxu0 0
    %510 = vmatprep.subr.bf16.mxu0 0
    %511 = vmatpush1.bf16.msra.mxu0 0
    %512 = vmatprep.mubr.bf16.mxu0 0
    %513 = vmatmul.mubr.bf16.gmra.mrb[0].mxu0 %v478
    %v514 = vpop.f32.mrb[0].mxu0
    %v515 = vadd.f32 0.0, %v514
    %v516 = vpop.f32.mrb[0].mxu0
    %v517 = vpop.f32.mrb[0].mxu0
    %v518 = vpop.f32.mrb[0].mxu0
    %519 = vdwg.mxu0
    %v520 = vadd.f32 %v472, %v515
    %v521 = vxor.u32 %v520, 2147483648
    %v522 = vmul.f32 %v521, 1.442695
    %v523 = vpow.pop %v522
    %v524 = vadd.f32 %v523, 1.0
    %v525 = vrcp.pop %v524
    %v526 = vmul.f32 1.0, %v525
    %v527 = vtanh.pop %v520
    %v528 = vmul.f32 %v526, %v460
    %530 = vrot.lane.b32.xlu0 %v527, 64
    %v531 = vpop.permute.xlu0 %530
    %v533 = vmul.f32 %v526, %v531
    %535 = vrot.lane.b32.xlu0 %v533, 32
    %v536 = vpop.permute.xlu0 %535
    %v538 = vadd.f32 %v528, %v536
    %v539 = vtanh.pop %v538
    %541 = vrot.lane.b32.xlu0 %v539, 64
    %v542 = vpop.permute.xlu0 %541
    %v544 = vmul.f32 %v526, %v542
    %546 = vrot.lane.b32.xlu0 %v544, 32
    %v547 = vpop.permute.xlu0 %546
    %549 = vst.msk [vmem:[#allocation3 + $0x4] sm:$0x1] %vm236, %v547
    %v550 = vld [vmem:[#allocation2 + $0x5] sm:$0x1]
    %v551 = vpack.c.bf16 %v544, %v544
    %553 = vrot.lane.b32.xlu0 %v551, 32
    %v554 = vpop.permute.xlu0 %553
    %v556 = vsel %vm102, %v554, 0
    %558 = vmatprep.subr.bf16.mxu0 0
    %559 = vmatpush1.bf16.msra.mxu0 %v160
    %560 = vmatprep.subr.bf16.mxu0 0
    %561 = vmatpush1.bf16.msra.mxu0 %v161
    %562 = vmatprep.subr.bf16.mxu0 0
    %563 = vmatpush1.bf16.msra.mxu0 0
    %564 = vmatprep.subr.bf16.mxu0 0
    %565 = vmatpush1.bf16.msra.mxu0 0
    %566 = vmatprep.subr.bf16.mxu0 0
    %567 = vmatpush1.bf16.msra.mxu0 0
    %568 = vmatprep.subr.bf16.mxu0 0
    %569 = vmatpush1.bf16.msra.mxu0 0
    %570 = vmatprep.subr.bf16.mxu0 0
    %571 = vmatpush1.bf16.msra.mxu0 0
    %572 = vmatprep.subr.bf16.mxu0 0
    %573 = vmatpush1.bf16.msra.mxu0 0
    %574 = vmatprep.subr.bf16.mxu0 0
    %575 = vmatpush1.bf16.msra.mxu0 0
    %576 = vmatprep.subr.bf16.mxu0 0
    %577 = vmatpush1.bf16.msra.mxu0 0
    %578 = vmatprep.subr.bf16.mxu0 0
    %579 = vmatpush1.bf16.msra.mxu0 0
    %580 = vmatprep.subr.bf16.mxu0 0
    %581 = vmatpush1.bf16.msra.mxu0 0
    %582 = vmatprep.subr.bf16.mxu0 0
    %583 = vmatpush1.bf16.msra.mxu0 0
    %584 = vmatprep.subr.bf16.mxu0 0
    %585 = vmatpush1.bf16.msra.mxu0 0
    %586 = vmatprep.subr.bf16.mxu0 0
    %587 = vmatpush1.bf16.msra.mxu0 0
    %588 = vmatprep.subr.bf16.mxu0 0
    %589 = vmatpush1.bf16.msra.mxu0 0
    %590 = vmatprep.mubr.bf16.mxu0 0
    %591 = vmatmul.mubr.bf16.gmra.mrb[0].mxu0 %v556
    %v592 = vpop.f32.mrb[0].mxu0
    %v593 = vadd.f32 0.0, %v592
    %v594 = vpop.f32.mrb[0].mxu0
    %v595 = vpop.f32.mrb[0].mxu0
    %v596 = vpop.f32.mrb[0].mxu0
    %597 = vdwg.mxu0
    %v598 = vadd.f32 %v550, %v593
    %v599 = vxor.u32 %v598, 2147483648
    %v600 = vmul.f32 %v599, 1.442695
    %v601 = vpow.pop %v600
    %v602 = vadd.f32 %v601, 1.0
    %v603 = vrcp.pop %v602
    %v604 = vmul.f32 1.0, %v603
    %v605 = vtanh.pop %v598
    %v606 = vmul.f32 %v604, %v538
    %608 = vrot.lane.b32.xlu0 %v605, 64
    %v609 = vpop.permute.xlu0 %608
    %v611 = vmul.f32 %v604, %v609
    %613 = vrot.lane.b32.xlu0 %v611, 32
    %v614 = vpop.permute.xlu0 %613
    %v616 = vadd.f32 %v606, %v614
    %v617 = vtanh.pop %v616
    %619 = vrot.lane.b32.xlu0 %v617, 64
    %v620 = vpop.permute.xlu0 %619
    %v622 = vmul.f32 %v604, %v620
    %624 = vrot.lane.b32.xlu0 %v622, 32
    %v625 = vpop.permute.xlu0 %624
    %627 = vst.msk [vmem:[#allocation3 + $0x5] sm:$0x1] %vm236, %v625
    %v628 = vld [vmem:[#allocation2 + $0x6] sm:$0x1]
    %v629 = vpack.c.bf16 %v622, %v622
    %631 = vrot.lane.b32.xlu0 %v629, 32
    %v632 = vpop.permute.xlu0 %631
    %v634 = vsel %vm102, %v632, 0
    %636 = vmatprep.subr.bf16.mxu0 0
    %637 = vmatpush1.bf16.msra.mxu0 %v160
    %638 = vmatprep.subr.bf16.mxu0 0
    %639 = vmatpush1.bf16.msra.mxu0 %v161
    %640 = vmatprep.subr.bf16.mxu0 0
    %641 = vmatpush1.bf16.msra.mxu0 0
    %642 = vmatprep.subr.bf16.mxu0 0
    %643 = vmatpush1.bf16.msra.mxu0 0
    %644 = vmatprep.subr.bf16.mxu0 0
    %645 = vmatpush1.bf16.msra.mxu0 0
    %646 = vmatprep.subr.bf16.mxu0 0
    %647 = vmatpush1.bf16.msra.mxu0 0
    %648 = vmatprep.subr.bf16.mxu0 0
    %649 = vmatpush1.bf16.msra.mxu0 0
    %650 = vmatprep.subr.bf16.mxu0 0
    %651 = vmatpush1.bf16.msra.mxu0 0
    %652 = vmatprep.subr.bf16.mxu0 0
    %653 = vmatpush1.bf16.msra.mxu0 0
    %654 = vmatprep.subr.bf16.mxu0 0
    %655 = vmatpush1.bf16.msra.mxu0 0
    %656 = vmatprep.subr.bf16.mxu0 0
    %657 = vmatpush1.bf16.msra.mxu0 0
    %658 = vmatprep.subr.bf16.mxu0 0
    %659 = vmatpush1.bf16.msra.mxu0 0
    %660 = vmatprep.subr.bf16.mxu0 0
    %661 = vmatpush1.bf16.msra.mxu0 0
    %662 = vmatprep.subr.bf16.mxu0 0
    %663 = vmatpush1.bf16.msra.mxu0 0
    %664 = vmatprep.subr.bf16.mxu0 0
    %665 = vmatpush1.bf16.msra.mxu0 0
    %666 = vmatprep.subr.bf16.mxu0 0
    %667 = vmatpush1.bf16.msra.mxu0 0
    %668 = vmatprep.mubr.bf16.mxu0 0
    %669 = vmatmul.mubr.bf16.gmra.mrb[0].mxu0 %v634
    %v670 = vpop.f32.mrb[0].mxu0
    %v671 = vadd.f32 0.0, %v670
    %v672 = vpop.f32.mrb[0].mxu0
    %v673 = vpop.f32.mrb[0].mxu0
    %v674 = vpop.f32.mrb[0].mxu0
    %675 = vdwg.mxu0
    %v676 = vadd.f32 %v628, %v671
    %v677 = vxor.u32 %v676, 2147483648
    %v678 = vmul.f32 %v677, 1.442695
    %v679 = vpow.pop %v678
    %v680 = vadd.f32 %v679, 1.0
    %v681 = vrcp.pop %v680
    %v682 = vmul.f32 1.0, %v681
    %v683 = vtanh.pop %v676
    %v684 = vmul.f32 %v682, %v616
    %686 = vrot.lane.b32.xlu0 %v683, 64
    %v687 = vpop.permute.xlu0 %686
    %v689 = vmul.f32 %v682, %v687
    %691 = vrot.lane.b32.xlu0 %v689, 32
    %v692 = vpop.permute.xlu0 %691
    %v694 = vadd.f32 %v684, %v692
    %v695 = vtanh.pop %v694
    %697 = vrot.lane.b32.xlu0 %v695, 64
    %v698 = vpop.permute.xlu0 %697
    %v700 = vmul.f32 %v682, %v698
    %702 = vrot.lane.b32.xlu0 %v700, 32
    %v703 = vpop.permute.xlu0 %702
    %705 = vst.msk [vmem:[#allocation3 + $0x6] sm:$0x1] %vm236, %v703
    %v706 = vld [vmem:[#allocation2 + $0x7] sm:$0x1]
    %v707 = vpack.c.bf16 %v700, %v700
    %709 = vrot.lane.b32.xlu0 %v707, 32
    %v710 = vpop.permute.xlu0 %709
    %v712 = vsel %vm102, %v710, 0
    %714 = vmatprep.subr.bf16.mxu0 0
    %715 = vmatpush1.bf16.msra.mxu0 %v160
    %716 = vmatprep.subr.bf16.mxu0 0
    %717 = vmatpush1.bf16.msra.mxu0 %v161
    %718 = vmatprep.subr.bf16.mxu0 0
    %719 = vmatpush1.bf16.msra.mxu0 0
    %720 = vmatprep.subr.bf16.mxu0 0
    %721 = vmatpush1.bf16.msra.mxu0 0
    %722 = vmatprep.subr.bf16.mxu0 0
    %723 = vmatpush1.bf16.msra.mxu0 0
    %724 = vmatprep.subr.bf16.mxu0 0
    %725 = vmatpush1.bf16.msra.mxu0 0
    %726 = vmatprep.subr.bf16.mxu0 0
    %727 = vmatpush1.bf16.msra.mxu0 0
    %728 = vmatprep.subr.bf16.mxu0 0
    %729 = vmatpush1.bf16.msra.mxu0 0
    %730 = vmatprep.subr.bf16.mxu0 0
    %731 = vmatpush1.bf16.msra.mxu0 0
    %732 = vmatprep.subr.bf16.mxu0 0
    %733 = vmatpush1.bf16.msra.mxu0 0
    %734 = vmatprep.subr.bf16.mxu0 0
    %735 = vmatpush1.bf16.msra.mxu0 0
    %736 = vmatprep.subr.bf16.mxu0 0
    %737 = vmatpush1.bf16.msra.mxu0 0
    %738 = vmatprep.subr.bf16.mxu0 0
    %739 = vmatpush1.bf16.msra.mxu0 0
    %740 = vmatprep.subr.bf16.mxu0 0
    %741 = vmatpush1.bf16.msra.mxu0 0
    %742 = vmatprep.subr.bf16.mxu0 0
    %743 = vmatpush1.bf16.msra.mxu0 0
    %744 = vmatprep.subr.bf16.mxu0 0
    %745 = vmatpush1.bf16.msra.mxu0 0
    %746 = vmatprep.mubr.bf16.mxu0 0
    %747 = vmatmul.mubr.bf16.gmra.mrb[0].mxu0 %v712
    %v748 = vpop.f32.mrb[0].mxu0
    %v749 = vadd.f32 0.0, %v748
    %v750 = vpop.f32.mrb[0].mxu0
    %v751 = vpop.f32.mrb[0].mxu0
    %v752 = vpop.f32.mrb[0].mxu0
    %753 = vdwg.mxu0
    %v754 = vadd.f32 %v706, %v749
    %v755 = vxor.u32 %v754, 2147483648
    %v756 = vmul.f32 %v755, 1.442695
    %v757 = vpow.pop %v756
    %v758 = vadd.f32 %v757, 1.0
    %v759 = vrcp.pop %v758
    %v760 = vmul.f32 1.0, %v759
    %v761 = vtanh.pop %v754
    %v762 = vmul.f32 %v760, %v694
    %764 = vrot.lane.b32.xlu0 %v761, 64
    %v765 = vpop.permute.xlu0 %764
    %v767 = vmul.f32 %v760, %v765
    %769 = vrot.lane.b32.xlu0 %v767, 32
    %v770 = vpop.permute.xlu0 %769
    %v772 = vadd.f32 %v762, %v770
    %v773 = vtanh.pop %v772
    %775 = vrot.lane.b32.xlu0 %v773, 64
    %v776 = vpop.permute.xlu0 %775
    %v778 = vmul.f32 %v760, %v776
    %780 = vrot.lane.b32.xlu0 %v778, 32
    %v781 = vpop.permute.xlu0 %780
    %783 = vst.msk [vmem:[#allocation3 + $0x7] sm:$0x1] %vm236, %v781
    %v784 = vld [vmem:[#allocation3] sm:$0xff]
    %v785 = vpack.c.bf16 %v784, %v784
    %v786 = vld [vmem:[#allocation10] sm:$0xf]
    %v787 = vld [vmem:[#allocation10 + $0x4] sm:$0xf]
    %v788 = vld [vmem:[#allocation10 + $0x8] sm:$0xf]
    %v789 = vld [vmem:[#allocation10 + $0xc] sm:$0xf]
    %v790 = vld [vmem:[%s5] sm:$0x1]
    %v792 = vlaneseq
    %v793 = vshrl.u32 %v792, 7
    %v794 = vsub.s32 0, %v793
    %v795 = vrot.slane %v790, %v794
    %v801 = vunpack.c.l.b16 %v786
    %v802 = vunpack.c.l.b16 %v787
    %v803 = vunpack.c.l.b16 %v788
    %v804 = vunpack.c.l.b16 %v789
    %v805 = vpack.c.b16 %v802, %v801
    %v806 = vpack.c.b16 %v804, %v803
    %v810 = vsel %vm102, %v785, 0
    %812 = vmatprep.subr.bf16.mxu0 0
    %813 = vmatpush1.bf16.msra.mxu0 %v805
    %814 = vmatprep.subr.bf16.mxu0 0
    %815 = vmatpush1.bf16.msra.mxu0 %v806
    %816 = vmatprep.subr.bf16.mxu0 0
    %817 = vmatpush1.bf16.msra.mxu0 0
    %818 = vmatprep.subr.bf16.mxu0 0
    %819 = vmatpush1.bf16.msra.mxu0 0
    %820 = vmatprep.subr.bf16.mxu0 0
    %821 = vmatpush1.bf16.msra.mxu0 0
    %822 = vmatprep.subr.bf16.mxu0 0
    %823 = vmatpush1.bf16.msra.mxu0 0
    %824 = vmatprep.subr.bf16.mxu0 0
    %825 = vmatpush1.bf16.msra.mxu0 0
    %826 = vmatprep.subr.bf16.mxu0 0
    %827 = vmatpush1.bf16.msra.mxu0 0
    %828 = vmatprep.subr.bf16.mxu0 0
    %829 = vmatpush1.bf16.msra.mxu0 0
    %830 = vmatprep.subr.bf16.mxu0 0
    %831 = vmatpush1.bf16.msra.mxu0 0
    %832 = vmatprep.subr.bf16.mxu0 0
    %833 = vmatpush1.bf16.msra.mxu0 0
    %834 = vmatprep.subr.bf16.mxu0 0
    %835 = vmatpush1.bf16.msra.mxu0 0
    %836 = vmatprep.subr.bf16.mxu0 0
    %837 = vmatpush1.bf16.msra.mxu0 0
    %838 = vmatprep.subr.bf16.mxu0 0
    %839 = vmatpush1.bf16.msra.mxu0 0
    %840 = vmatprep.subr.bf16.mxu0 0
    %841 = vmatpush1.bf16.msra.mxu0 0
    %842 = vmatprep.subr.bf16.mxu0 0
    %843 = vmatpush1.bf16.msra.mxu0 0
    %844 = vmatprep.mubr.bf16.mxu0 0
    %845 = vmatmul.mubr.bf16.gmra.mrb[0].mxu0 %v810
    %v846 = vpop.f32.mrb[0].mxu0
    %v847 = vadd.f32 %v795, %v846
    %v848 = vpop.f32.mrb[0].mxu0
    %v849 = vpop.f32.mrb[0].mxu0
    %v850 = vpop.f32.mrb[0].mxu0
    %851 = vdwg.mxu0
    %852 = vmax.xlane.f32.xlu0 %v847
    %v853 = vpop.xlane.xlu0 %852
    %v854 = vsub.f32 %v847, %v853
    %v855 = vmul.f32 %v854, 1.442695
    %v856 = vpow.pop %v855
    %857 = vadd.xlane.f32.xlu0 %v856
    %v858 = vpop.xlane.xlu0 %857
    %v859 = vlog2.pop %v858
    %v860 = vmul.f32 %v859, 0.6931472
    %v861 = vsub.f32 %v854, %v860
    %862 = vst [vmem:[#allocation12] sm:$0xff] %v861
    // Predicated region
    $region42: #{tpu_custom_call.1} parent=1 // pred_check
      _
    $region43: #{tpu_custom_call.1} parent=1 // pred_check_branch
      %864 = sbr.rel (0) target = $region45
    $region44: #{tpu_custom_call.1} parent=1 // pred_region
      %s866 = ssub.s32 128, 128
      %867 = vsyncadd [#allocation6], %s866
      %s869 = sshll.u32 [#allocation12], 4
      %s870 = int_to_ptr.vmem [resolvable:$true] %s869
      %872 = dma.vmem_to_hbm [thread:$0]  %s870, 128, %s6, [#allocation6]
    $region45: #{tpu_custom_call.1} parent=1 // pred_fallthru
      _
    // Predicated region
    $region46: #{tpu_custom_call.1} parent=1 // pred_check
      _
    $region47: #{tpu_custom_call.1} parent=1 // pred_check_branch
      %874 = sbr.rel (0) target = $region49
    $region48: #{tpu_custom_call.1} parent=1 // pred_region
      %875 = dma.done [#allocation6], 128
    $region49: #{tpu_custom_call.1} parent=1 // pred_fallthru
      _
    %876 = vsyncpa [#allocation5], 1
    %877 = vsyncpa [#allocation8], 1
    %878 = vsyncpa [#allocation11], 1
    %879 = vsyncpa [#allocation6], 1

</llo_original>
